<compile_context>
chip_gen: v5e
topology: v5e:2x2
jax: 0.10.0
libtpu: 0.0.40
codegen_flags: <defaults>
</compile_context>

<pallas_src>
import functools
import math

import jax
import jax.numpy as jnp
from jax.experimental import pallas as pl
from jax.experimental.pallas import tpu as pltpu

_LANES = 128
_MAX_TILE_ROWS = 4096   # 4096 * 128 * 4B = 2 MiB per input block
_NCORES = 2             # per-core partials; sequential outer loop on 1-TC chips


def _round_up(x, m):
    return (x + m - 1) // m * m


def _binloss_kernel(hard_ref, soft_ref, logsum_ref, hardsum_ref, *,
                    tile_rows, rows_total):
    c = pl.program_id(0)          # core-split axis ("parallel")
    i = pl.program_id(1)          # sequential reduction axis ("arbitrary")

    @pl.when(i == 0)
    def _():
        logsum_ref[...] = jnp.zeros_like(logsum_ref)
        hardsum_ref[...] = jnp.zeros_like(hardsum_ref)

    hard = hard_ref[...].astype(jnp.float32)
    soft = soft_ref[...].astype(jnp.float32)

    # Global row id of every element's row.  Masks (a) the ragged tail of the
    # last row-block and (b) redundant clamped blocks when the grid overshoots
    # (index_map clamps the block index, so no fully-OOB DMA is issued).
    block_idx = c * pl.num_programs(1) + i
    row_ids = block_idx * tile_rows + jax.lax.broadcasted_iota(
        jnp.int32, hard.shape, 0)
    row_valid = row_ids < rows_total

    # Exact `hard == 1` compare to match torch's boolean-mask indexing.
    logs = jnp.log(jnp.maximum(soft, jnp.float32(1e-12)))
    num_mask = jnp.logical_and(row_valid, hard == jnp.float32(1.0))

    masked_logs = jnp.where(num_mask, logs, jnp.float32(0.0))
    masked_hard = jnp.where(row_valid, hard, jnp.float32(0.0))

    # Lane-preserving accumulation: reshape only splits the leading dim (the
    # (8, 128) minor tile is untouched), so this lowers to plain vreg adds.
    logsum_ref[...] += jnp.sum(
        masked_logs.reshape(tile_rows // 8, 8, _LANES), axis=0)
    hardsum_ref[...] += jnp.sum(
        masked_hard.reshape(tile_rows // 8, 8, _LANES), axis=0)


def bin_loss(hard_attention, soft_attention):
    """Pallas BinLoss.  Accepts any-shaped arrays of identical shape."""
    assert hard_attention.shape == soft_attention.shape

    hard = hard_attention.reshape(-1)
    soft = soft_attention.reshape(-1)
    n = hard.shape[0]

    # Minimal lane alignment only (pad < 128 elements; neutral values:
    # hard -> 0 adds nothing to the denominator, soft -> 1 never selected).
    # Row-tile padding is handled in-kernel via the iota row mask, so there is
    # no large pad copy.
    rem = n % _LANES
    if rem:
        pad = _LANES - rem
        hard = jnp.pad(hard, (0, pad), constant_values=0)
        soft = jnp.pad(soft, (0, pad), constant_values=1)

    rows = hard.shape[0] // _LANES
    hard2 = hard.reshape(rows, _LANES)
    soft2 = soft.reshape(rows, _LANES)

    tile_rows = min(_MAX_TILE_ROWS, _round_up(rows, 16))
    nblocks = pl.cdiv(rows, tile_rows)          # row blocks actually present
    spc = pl.cdiv(nblocks, _NCORES)             # steps per core

    def in_map(c, i):
        # Clamp so overshooting steps re-read the last valid block (their
        # contribution is masked to zero in the kernel by the row mask).
        return (jnp.minimum(c * spc + i, nblocks - 1), 0)

    kernel = functools.partial(_binloss_kernel,
                               tile_rows=tile_rows, rows_total=rows)

    logsum_p, hardsum_p = pl.pallas_call(
        kernel,
        out_shape=(
            jax.ShapeDtypeStruct((_NCORES * 8, _LANES), jnp.float32),
            jax.ShapeDtypeStruct((_NCORES * 8, _LANES), jnp.float32),
        ),
        grid_spec=pltpu.PrefetchScalarGridSpec(
            num_scalar_prefetch=0,
            grid=(_NCORES, spc),
            in_specs=[
                pl.BlockSpec((tile_rows, _LANES), in_map),
                pl.BlockSpec((tile_rows, _LANES), in_map),
            ],
            out_specs=(
                pl.BlockSpec((8, _LANES), lambda c, i: (c, 0)),
                pl.BlockSpec((8, _LANES), lambda c, i: (c, 0)),
            ),
        ),
        compiler_params=pltpu.CompilerParams(
            dimension_semantics=("parallel", "arbitrary")),
    )(hard2, soft2)

    # Single cheap cross-lane reduce + divide on tiny partials, in JAX.
    log_sum = jnp.sum(logsum_p)
    hard_sum = jnp.sum(hardsum_p)
    return -log_sum / hard_sum


def _reference(hard, soft):
    hard = hard.astype(jnp.float32)
    soft = soft.astype(jnp.float32)
    mask = hard == 1.0
    logs = jnp.log(jnp.maximum(soft, 1e-12))
    log_sum = jnp.sum(jnp.where(mask, logs, 0.0))
    return -log_sum / jnp.sum(hard)


if __name__ == "__main__":
    key = jax.random.PRNGKey(0)
    k1, k2 = jax.random.split(key)

    B, C, H, W = 2, 4, 16, 16  # NCHW, attention-map-like shape
    # hard attention: binary mask
    hard = (jax.random.uniform(k1, (B, C, H, W)) > 0.5).astype(jnp.float32)
    # soft attention: probabilities in (0, 1)
    soft = jax.random.uniform(k2, (B, C, H, W), minval=1e-6, maxval=1.0)
    soft = soft.astype(jnp.float32)

    out = bin_loss(hard, soft)
    out = jax.block_until_ready(out)

    ref = _reference(hard, soft)
    assert jnp.allclose(out, ref, rtol=1e-5, atol=1e-5), (out, ref)

    print("KERNEL_OK")
</pallas_src>

<mosaic_0001>
module attributes {stable_mosaic.version = 11 : i64} {
  func.func @_binloss_kernel(%arg0: i32, %arg1: i32, %arg2: memref<16x128xf32, #tpu.memory_space<vmem>>, %arg3: memref<16x128xf32, #tpu.memory_space<vmem>>, %arg4: memref<8x128xf32, #tpu.memory_space<vmem>>, %arg5: memref<8x128xf32, #tpu.memory_space<vmem>>) attributes {dimension_semantics = [#tpu.dimension_semantics<parallel>, #tpu.dimension_semantics<arbitrary>], iteration_bounds = array<i64: 2, 1>, scalar_prefetch = 0 : i64, scratch_operands = 0 : i64, tpu.core_type = #tpu.core_type<tc>, window_params = [{transform_indices = @transform_0, window_bounds = array<i64: 16, 128>}, {transform_indices = @transform_1, window_bounds = array<i64: 16, 128>}, {transform_indices = @transform_2, window_bounds = array<i64: 8, 128>}, {transform_indices = @transform_3, window_bounds = array<i64: 8, 128>}]} {
    %c0_i32 = arith.constant 0 : i32
    %0 = arith.cmpi eq, %arg1, %c0_i32 : i32
    %1 = arith.extui %0 : i1 to i32
    %c0_i32_0 = arith.constant 0 : i32
    %2 = arith.cmpi ne, %1, %c0_i32_0 : i32
    scf.if %2 {
      %cst_18 = arith.constant 0.000000e+00 : f32
      %33 = vector.broadcast %cst_18 : f32 to vector<8x128xf32>
      %c0_19 = arith.constant 0 : index
      %c0_20 = arith.constant 0 : index
      %34 = vector.load %arg4[%c0_19, %c0_20] : memref<8x128xf32, #tpu.memory_space<vmem>>, vector<8x128xf32>
      tpu.vector_store %arg4[%c0_19, %c0_20], %33 {strides = array<i32>} : memref<8x128xf32, #tpu.memory_space<vmem>>, vector<8x128xf32>,
      %cst_21 = arith.constant 0.000000e+00 : f32
      %35 = vector.broadcast %cst_21 : f32 to vector<8x128xf32>
      %c0_22 = arith.constant 0 : index
      %c0_23 = arith.constant 0 : index
      %36 = vector.load %arg5[%c0_22, %c0_23] : memref<8x128xf32, #tpu.memory_space<vmem>>, vector<8x128xf32>
      tpu.vector_store %arg5[%c0_22, %c0_23], %35 {strides = array<i32>} : memref<8x128xf32, #tpu.memory_space<vmem>>, vector<8x128xf32>,
    } else {
    }
    %c0 = arith.constant 0 : index
    %c0_1 = arith.constant 0 : index
    %3 = vector.load %arg2[%c0, %c0_1] : memref<16x128xf32, #tpu.memory_space<vmem>>, vector<16x128xf32>
    %c0_2 = arith.constant 0 : index
    %c0_3 = arith.constant 0 : index
    %4 = vector.load %arg3[%c0_2, %c0_3] : memref<16x128xf32, #tpu.memory_space<vmem>>, vector<16x128xf32>
    %c1_i32 = arith.constant 1 : i32
    %5 = arith.muli %arg0, %c1_i32 : i32
    %6 = arith.addi %5, %arg1 : i32
    %c16_i32 = arith.constant 16 : i32
    %7 = arith.muli %6, %c16_i32 : i32
    %8 = tpu.iota {dimensions = array<i32: 0>} : vector<16x128xi32>
    %9 = vector.broadcast %7 : i32 to vector<16x128xi32>
    %10 = arith.addi %9, %8 : vector<16x128xi32>
    %c16_i32_4 = arith.constant 16 : i32
    %11 = vector.broadcast %c16_i32_4 : i32 to vector<16x128xi32>
    %12 = arith.cmpi slt, %10, %11 : vector<16x128xi32>
    %cst = arith.constant 9.99999996E-13 : f32
    %13 = vector.broadcast %cst : f32 to vector<16x128xf32>
    %14 = arith.maximumf %4, %13 : vector<16x128xf32>
    %15 = math.log %14 : vector<16x128xf32>
    %cst_5 = arith.constant 1.000000e+00 : f32
    %16 = vector.broadcast %cst_5 : f32 to vector<16x128xf32>
    %17 = arith.cmpf oeq, %3, %16 : vector<16x128xf32>
    %18 = arith.andi %12, %17 : vector<16x128xi1>
    %cst_6 = arith.constant 0.000000e+00 : f32
    %19 = vector.broadcast %cst_6 : f32 to vector<16x128xf32>
    %20 = arith.select %18, %15, %19 : vector<16x128xi1>, vector<16x128xf32>
    %cst_7 = arith.constant 0.000000e+00 : f32
    %21 = vector.broadcast %cst_7 : f32 to vector<16x128xf32>
    %22 = arith.select %12, %3, %21 : vector<16x128xi1>, vector<16x128xf32>
    %c0_8 = arith.constant 0 : index
    %c0_9 = arith.constant 0 : index
    %23 = vector.load %arg4[%c0_8, %c0_9] : memref<8x128xf32, #tpu.memory_space<vmem>>, vector<8x128xf32>
    %24 = vector.shape_cast %20 : vector<16x128xf32> to vector<2x8x128xf32>
    %cst_10 = arith.constant dense<0.000000e+00> : vector<8x128xf32>
    %25 = vector.multi_reduction <add>, %24, %cst_10 [0] : vector<2x8x128xf32> to vector<8x128xf32>
    %26 = arith.addf %23, %25 : vector<8x128xf32>
    %c0_11 = arith.constant 0 : index
    %c0_12 = arith.constant 0 : index
    %27 = vector.load %arg4[%c0_11, %c0_12] : memref<8x128xf32, #tpu.memory_space<vmem>>, vector<8x128xf32>
    tpu.vector_store %arg4[%c0_11, %c0_12], %26 {strides = array<i32>} : memref<8x128xf32, #tpu.memory_space<vmem>>, vector<8x128xf32>,
    %c0_13 = arith.constant 0 : index
    %c0_14 = arith.constant 0 : index
    %28 = vector.load %arg5[%c0_13, %c0_14] : memref<8x128xf32, #tpu.memory_space<vmem>>, vector<8x128xf32>
    %29 = vector.shape_cast %22 : vector<16x128xf32> to vector<2x8x128xf32>
    %cst_15 = arith.constant dense<0.000000e+00> : vector<8x128xf32>
    %30 = vector.multi_reduction <add>, %29, %cst_15 [0] : vector<2x8x128xf32> to vector<8x128xf32>
    %31 = arith.addf %28, %30 : vector<8x128xf32>
    %c0_16 = arith.constant 0 : index
    %c0_17 = arith.constant 0 : index
    %32 = vector.load %arg5[%c0_16, %c0_17] : memref<8x128xf32, #tpu.memory_space<vmem>>, vector<8x128xf32>
    tpu.vector_store %arg5[%c0_16, %c0_17], %31 {strides = array<i32>} : memref<8x128xf32, #tpu.memory_space<vmem>>, vector<8x128xf32>,
    return
  }
  func.func @transform_0(%arg0: i32, %arg1: i32) -> (i32, i32) {
    %c1_i32 = arith.constant 1 : i32
    %0 = arith.muli %arg0, %c1_i32 : i32
    %1 = arith.addi %0, %arg1 : i32
    %c0_i32 = arith.constant 0 : i32
    %2 = arith.minsi %1, %c0_i32 : i32
    %c0_i32_0 = arith.constant 0 : i32
    %c0_i32_1 = arith.constant 0 : i32
    return %2, %c0_i32_0 : i32, i32
  }
  func.func @transform_1(%arg0: i32, %arg1: i32) -> (i32, i32) {
    %c1_i32 = arith.constant 1 : i32
    %0 = arith.muli %arg0, %c1_i32 : i32
    %1 = arith.addi %0, %arg1 : i32
    %c0_i32 = arith.constant 0 : i32
    %2 = arith.minsi %1, %c0_i32 : i32
    %c0_i32_0 = arith.constant 0 : i32
    %c0_i32_1 = arith.constant 0 : i32
    return %2, %c0_i32_0 : i32, i32
  }
  func.func @transform_2(%arg0: i32, %arg1: i32) -> (i32, i32) {
    %c0_i32 = arith.constant 0 : i32
    %c0_i32_0 = arith.constant 0 : i32
    return %arg0, %c0_i32 : i32, i32
  }
  func.func @transform_3(%arg0: i32, %arg1: i32) -> (i32, i32) {
    %c0_i32 = arith.constant 0 : i32
    %c0_i32_0 = arith.constant 0 : i32
    return %arg0, %c0_i32 : i32, i32
  }
}

</mosaic_0001>

<llo_original>
// kernel: tpu_custom_call.1
$region0: #{tpu_custom_call.1}
  #allocation0 [shape = 'u32[]', space=smem, size = 0x4, offset = 0x4, fixed_abs, tag = 'smem constant byte address 0x4 - core index']
  #allocation1 [shape = 'u32[72,128]{1,0:T(1,128)}', space=vmem, size = 0x9000, scoped, tag = 'internal scratch']
  %s0 = inlined_call_operand.hbm [shape: f32[16,128], index: 0, kind: input, shape index: {}]
  %s1 = inlined_call_operand.hbm [shape: f32[16,128], index: 1, kind: input, shape index: {}]
  %s2 = inlined_call_operand.hbm [shape: f32[16,128], index: 2, kind: output, shape index: {0}]
  %s3 = inlined_call_operand.hbm [shape: f32[16,128], index: 3, kind: output, shape index: {1}]
  %4 = xla_tuple %s2, %s3
  %s5 = sld [smem:[#allocation0]]
  $region61: #{tpu_custom_call.1} parent=0
    _
  %s7 = ssub.s32 1, %s5
  %s8 = scalar_select 0, %s7, %s5
  $region1: #{tpu_custom_call.1} parent=0
    #allocation2 [shape = 'u8[16384]{0}', space=vmem, size = 0x4000, scoped, tag = 'input window, operand 0']
    #allocation3 [shape = 's32[2]{0}', space=sflag, size = 0x8, scoped, tag = 'scoped memory for tpu_custom_call.1']
    #allocation4 [shape = 's32[2]{0}', space=sflag, size = 0x8, scoped, tag = 'scoped memory for tpu_custom_call.1']
    #allocation5 [shape = 'u8[16384]{0}', space=vmem, size = 0x4000, scoped, tag = 'input window, operand 1']
    #allocation6 [shape = 's32[2]{0}', space=sflag, size = 0x8, scoped, tag = 'scoped memory for tpu_custom_call.1']
    #allocation7 [shape = 'u8[8192]{0}', space=vmem, size = 0x2000, scoped, tag = 'output window, operand 0']
    #allocation8 [shape = 'u8[8192]{0}', space=vmem, size = 0x2000, scoped, tag = 'output window, operand 1']
    #allocation9 [shape = 's32[2]{0}', space=sflag, size = 0x8, scoped, tag = 'scoped memory for tpu_custom_call.1']
    %9 = vsyncpa [#allocation3], 0
    %s10 = scalar_lea.sflag [#allocation3], 1
    %11 = vsyncpa %s10, 0
    %12 = vsyncpa [#allocation6], 0
    %s13 = scalar_lea.sflag [#allocation6], 1
    %14 = vsyncpa %s13, 0
    %15 = vsyncpa [#allocation4], 0
    %s16 = scalar_lea.sflag [#allocation4], 1
    %17 = vsyncpa %s16, 0
    %18 = vsyncpa [#allocation9], 0
    %s19 = scalar_lea.sflag [#allocation9], 1
    %20 = vsyncpa %s19, 0
    loop: start=0, step=1, limit=4
    $region2: #{tpu_custom_call.1} parent=1 // loop_pre_header
      _
    $region3: #{tpu_custom_call.1} parent=1 // loop_header
      %s22 = sphi 0, %s26
      %p23 = scmp.ge.s32.totalorder %s22, 4
      %s29 = sphi 0, %s41
      %s30 = sphi 0, %s37
      %s31 = sphi 0, %s29
      %s32 = sphi 0, %s30
      %s33 = sphi 0, %s31
      %s34 = sphi 0, %s32
      %s50 = sphi 0, %s52
      %s53 = sphi 0, %s50
      %s54 = sphi 0, %s53
      %s70 = sphi 0, %s54
      %s82 = sphi 0, %s84
      %s85 = sphi 0, %s82
      %s86 = sphi 0, %s85
      %s102 = sphi 0, %s86
      %s108 = sphi 0, %s110
      %s111 = sphi 0, %s108
      %s112 = sphi 0, %s111
      %s128 = sphi 0, %s112
      %s134 = sphi 0, %s136
      %s137 = sphi 0, %s134
      %s138 = sphi 0, %s137
      %s154 = sphi 0, %s138
    $region4: #{tpu_custom_call.1} parent=1 // loop_header_branch
      %25 = sbr.rel (%p23) target = $region8
    $region5: #{tpu_custom_call.1} parent=1 // loop_body
      %s27 = ssub.s32 %s22, 1
      %s28 = ssub.s32 %s22, 2
      %s35 = sadd.s32 1, %s30
      %p36 = scmp.ge.s32.totalorder %s35, 1
      %s37 = scalar_select %p36, 0, %s35
      %s38 = sadd.s32 1, %s29
      %s39 = scalar_select %p36, %s38, %s29
      %p40 = scmp.ge.s32.totalorder %s39, 2
      %s41 = scalar_select %p40, 0, %s39
      %s42 = sadd.s32 %s29, %s30
      %p43 = scmp.lt.s32.totalorder %s42, 0
      %s44 = scalar_select %p43, %s42, 0
      %s45 = sadd.s32 %s41, %s37
      %p46 = scmp.lt.s32.totalorder %s45, 0
      %s47 = scalar_select %p46, %s45, 0
      %s48 = ssub.s32 %s44, %s47
      %p49 = scmp.eq.s32.totalorder %s48, 0
      %s51 = sadd.s32 %s50, 1
      %s52 = scalar_select %p49, %s50, %s51
      %p55 = pneg %p49
      %p56 = scmp.eq.s32.totalorder %s22, 1
      %p57 = por %p55, %p56
      %p58 = scmp.ne.s32.totalorder %s50, %s53
      %p59 = scmp.eq.s32.totalorder %s22, 0
      %p60 = por %p58, %p59
      %p61 = scmp.ne.s32.totalorder %s50, %s53
      %p62 = scmp.eq.s32.totalorder %s27, 1
      %p63 = por %p61, %p62
      %p64 = scmp.ne.s32.totalorder %s53, %s54
      %p65 = scmp.eq.s32.totalorder %s27, 0
      %p66 = por %p64, %p65
      %p67 = scmp.ne.s32.totalorder %s53, %s54
      %p68 = scmp.eq.s32.totalorder %s28, 1
      %p69 = por %p67, %p68
      %p71 = scmp.ne.s32.totalorder %s54, %s70
      %p72 = scmp.eq.s32.totalorder %s28, 0
      %p73 = por %p71, %p72
      %s74 = sadd.s32 %s29, %s30
      %p75 = scmp.lt.s32.totalorder %s74, 0
      %s76 = scalar_select %p75, %s74, 0
      %s77 = sadd.s32 %s41, %s37
      %p78 = scmp.lt.s32.totalorder %s77, 0
      %s79 = scalar_select %p78, %s77, 0
      %s80 = ssub.s32 %s76, %s79
      %p81 = scmp.eq.s32.totalorder %s80, 0
      %s83 = sadd.s32 %s82, 1
      %s84 = scalar_select %p81, %s82, %s83
      %p87 = pneg %p81
      %p88 = scmp.eq.s32.totalorder %s22, 1
      %p89 = por %p87, %p88
      %p90 = scmp.ne.s32.totalorder %s82, %s85
      %p91 = scmp.eq.s32.totalorder %s22, 0
      %p92 = por %p90, %p91
      %p93 = scmp.ne.s32.totalorder %s82, %s85
      %p94 = scmp.eq.s32.totalorder %s27, 1
      %p95 = por %p93, %p94
      %p96 = scmp.ne.s32.totalorder %s85, %s86
      %p97 = scmp.eq.s32.totalorder %s27, 0
      %p98 = por %p96, %p97
      %p99 = scmp.ne.s32.totalorder %s85, %s86
      %p100 = scmp.eq.s32.totalorder %s28, 1
      %p101 = por %p99, %p100
      %p103 = scmp.ne.s32.totalorder %s86, %s102
      %p104 = scmp.eq.s32.totalorder %s28, 0
      %p105 = por %p103, %p104
      %s106 = ssub.s32 %s29, %s41
      %p107 = scmp.eq.s32.totalorder %s106, 0
      %s109 = sadd.s32 %s108, 1
      %s110 = scalar_select %p107, %s108, %s109
      %p113 = pneg %p107
      %p114 = scmp.eq.s32.totalorder %s22, 1
      %p115 = por %p113, %p114
      %p116 = scmp.ne.s32.totalorder %s108, %s111
      %p117 = scmp.eq.s32.totalorder %s22, 0
      %p118 = por %p116, %p117
      %p119 = scmp.ne.s32.totalorder %s108, %s111
      %p120 = scmp.eq.s32.totalorder %s27, 1
      %p121 = por %p119, %p120
      %p122 = scmp.ne.s32.totalorder %s111, %s112
      %p123 = scmp.eq.s32.totalorder %s27, 0
      %p124 = por %p122, %p123
      %p125 = scmp.ne.s32.totalorder %s111, %s112
      %p126 = scmp.eq.s32.totalorder %s28, 1
      %p127 = por %p125, %p126
      %p129 = scmp.ne.s32.totalorder %s112, %s128
      %p130 = scmp.eq.s32.totalorder %s28, 0
      %p131 = por %p129, %p130
      %s132 = ssub.s32 %s29, %s41
      %p133 = scmp.eq.s32.totalorder %s132, 0
      %s135 = sadd.s32 %s134, 1
      %s136 = scalar_select %p133, %s134, %s135
      %p139 = pneg %p133
      %p140 = scmp.eq.s32.totalorder %s22, 1
      %p141 = por %p139, %p140
      %p142 = scmp.ne.s32.totalorder %s134, %s137
      %p143 = scmp.eq.s32.totalorder %s22, 0
      %p144 = por %p142, %p143
      %p145 = scmp.ne.s32.totalorder %s134, %s137
      %p146 = scmp.eq.s32.totalorder %s27, 1
      %p147 = por %p145, %p146
      %p148 = scmp.ne.s32.totalorder %s137, %s138
      %p149 = scmp.eq.s32.totalorder %s27, 0
      %p150 = por %p148, %p149
      %p151 = scmp.ne.s32.totalorder %s137, %s138
      %p152 = scmp.eq.s32.totalorder %s28, 1
      %p153 = por %p151, %p152
      %p155 = scmp.ne.s32.totalorder %s138, %s154
      %p156 = scmp.eq.s32.totalorder %s28, 0
      %p157 = por %p155, %p156
      %p158 = scmp.le.s32.totalorder 1, %s22
      %p159 = scmp.lt.s32.totalorder %s22, 3
      %p160 = pnand %p158, %p159
      %p161 = pneg %p160
      // Predicated region
      $region9: #{tpu_custom_call.1} parent=5 // pred_check
        _
      $region10: #{tpu_custom_call.1} parent=5 // pred_check_branch
        %163 = sbr.rel (%p160) target = $region12
      $region11: #{tpu_custom_call.1} parent=5 // pred_region
        %s164 = ssub.s32 %s22, 1
      $region12: #{tpu_custom_call.1} parent=5 // pred_fallthru
        _
      %p165 = scmp.lt.s32.totalorder %s22, 2
      // Predicated region
      $region13: #{tpu_custom_call.1} parent=5 // pred_check
        %p166 = pneg %p165
      $region14: #{tpu_custom_call.1} parent=5 // pred_check_branch
        %168 = sbr.rel (%p166) target = $region16
      $region15: #{tpu_custom_call.1} parent=5 // pred_region
        // Predicated region
        $region17: #{tpu_custom_call.1} parent=15 // pred_check
          %p169 = pneg %p60
        $region18: #{tpu_custom_call.1} parent=15 // pred_check_branch
          %171 = sbr.rel (%p169) target = $region20
        $region19: #{tpu_custom_call.1} parent=15 // pred_region
          %s172 = sand.u32 %s50, 1
          %s173 = scalar_lea.sflag [#allocation3], %s172
          %s174 = sand.u32 %s50, 1
          %s175 = smul.addr %s174, 16
          %s176 = scalar_lea.vmem [#allocation2], %s175
          %s177 = sadd.s32 %s29, %s30
          %p178 = scmp.lt.s32.totalorder %s177, 0
          %s179 = scalar_select %p178, %s177, 0
          %s180 = smul.u32 2, %s179
          %182 = vsyncadd %s173, 0
          %s183 = smul.addr %s180, 8
          %s184 = scalar_lea.hbm %s0, %s183
          %s185 = sshll.u32 %s184, 4
          %s186 = int_to_ptr.hbm [resolvable:$true] %s185
          %s187 = sshll.u32 %s176, 4
          %s188 = int_to_ptr.vmem [resolvable:$true] %s187
          %193 = dma.hbm_to_vmem [thread:$0]  %s186, 256, %s188, %s173, 128, 128, 8
        $region20: #{tpu_custom_call.1} parent=15 // pred_fallthru
          _
        // Predicated region
        $region21: #{tpu_custom_call.1} parent=15 // pred_check
          %p194 = pneg %p92
        $region22: #{tpu_custom_call.1} parent=15 // pred_check_branch
          %196 = sbr.rel (%p194) target = $region24
        $region23: #{tpu_custom_call.1} parent=15 // pred_region
          %s197 = sand.u32 %s82, 1
          %s198 = scalar_lea.sflag [#allocation6], %s197
          %s199 = sand.u32 %s82, 1
          %s200 = smul.addr %s199, 16
          %s201 = scalar_lea.vmem [#allocation5], %s200
          %s202 = sadd.s32 %s29, %s30
          %p203 = scmp.lt.s32.totalorder %s202, 0
          %s204 = scalar_select %p203, %s202, 0
          %s205 = smul.u32 2, %s204
          %207 = vsyncadd %s198, 0
          %s208 = smul.addr %s205, 8
          %s209 = scalar_lea.hbm %s1, %s208
          %s210 = sshll.u32 %s209, 4
          %s211 = int_to_ptr.hbm [resolvable:$true] %s210
          %s212 = sshll.u32 %s201, 4
          %s213 = int_to_ptr.vmem [resolvable:$true] %s212
          %218 = dma.hbm_to_vmem [thread:$0]  %s211, 256, %s213, %s198, 128, 128, 8
        $region24: #{tpu_custom_call.1} parent=15 // pred_fallthru
          _
      $region16: #{tpu_custom_call.1} parent=5 // pred_fallthru
        _
      %p219 = scmp.le.s32.totalorder 1, %s22
      %p220 = scmp.lt.s32.totalorder %s22, 3
      %p221 = pnand %p219, %p220
      %p222 = pneg %p221
      // Predicated region
      $region25: #{tpu_custom_call.1} parent=5 // pred_check
        _
      $region26: #{tpu_custom_call.1} parent=5 // pred_check_branch
        %224 = sbr.rel (%p221) target = $region28
      $region27: #{tpu_custom_call.1} parent=5 // pred_region
        %s225 = ssub.s32 %s22, 1
        %s226 = sand.u32 %s53, 1
        %s227 = scalar_lea.sflag [#allocation3], %s226
        %s228 = sand.u32 %s53, 1
        %s229 = smul.addr %s228, 16
        %s230 = scalar_lea.vmem [#allocation2], %s229
        // Predicated region
        $region29: #{tpu_custom_call.1} parent=27 // pred_check
          %p231 = pneg %p66
        $region30: #{tpu_custom_call.1} parent=27 // pred_check_branch
          %233 = sbr.rel (%p231) target = $region32
        $region31: #{tpu_custom_call.1} parent=27 // pred_region
          %235 = dma.done %s227, 256
        $region32: #{tpu_custom_call.1} parent=27 // pred_fallthru
          _
        %s236 = sand.u32 %s85, 1
        %s237 = scalar_lea.sflag [#allocation6], %s236
        %s238 = sand.u32 %s85, 1
        %s239 = smul.addr %s238, 16
        %s240 = scalar_lea.vmem [#allocation5], %s239
        // Predicated region
        $region33: #{tpu_custom_call.1} parent=27 // pred_check
          %p241 = pneg %p98
        $region34: #{tpu_custom_call.1} parent=27 // pred_check_branch
          %243 = sbr.rel (%p241) target = $region36
        $region35: #{tpu_custom_call.1} parent=27 // pred_region
          %245 = dma.done %s237, 256
        $region36: #{tpu_custom_call.1} parent=27 // pred_fallthru
          _
        %s246 = sand.u32 %s53, 1
        %s247 = scalar_lea.sflag [#allocation3], %s246
        %s248 = sand.u32 %s53, 1
        %s249 = smul.addr %s248, 16
        %s250 = scalar_lea.vmem [#allocation2], %s249
        %p251 = pneg %p66
        %p252 = pneg %p63
        %s253 = sand.u32 %s85, 1
        %s254 = scalar_lea.sflag [#allocation6], %s253
        %s255 = sand.u32 %s85, 1
        %s256 = smul.addr %s255, 16
        %s257 = scalar_lea.vmem [#allocation5], %s256
        %p258 = pneg %p98
        %p259 = pneg %p95
        %p260 = pneg %p124
        %p261 = pneg %p121
        %s262 = sand.u32 %s111, 1
        %s263 = scalar_lea.sflag [#allocation4], %s262
        %s264 = sand.u32 %s111, 1
        %s265 = smul.addr %s264, 8
        %s266 = scalar_lea.vmem [#allocation7], %s265
        %p267 = pneg %p150
        %p268 = pneg %p147
        %s269 = sand.u32 %s137, 1
        %s270 = scalar_lea.sflag [#allocation9], %s269
        %s271 = sand.u32 %s137, 1
        %s272 = smul.addr %s271, 8
        %s273 = scalar_lea.vmem [#allocation8], %s272
        %s274 = sadd.s32 %s31, %s32
        %p275 = scmp.lt.s32.totalorder %s274, 0
        %s276 = scalar_select %p275, %s274, 0
        %s277 = smul.u32 2, %s276
        %s278 = sadd.s32 %s31, %s32
        %p279 = scmp.lt.s32.totalorder %s278, 0
        %s280 = scalar_select %p279, %s278, 0
        %s281 = smul.u32 2, %s280
        %p282 = scmp.eq.s32.totalorder %s32, 0
        // Predicated region
        $region37: #{tpu_custom_call.1} parent=27 // pred_check
          %p283 = pneg %p282
        $region38: #{tpu_custom_call.1} parent=27 // pred_check_branch
          %285 = sbr.rel (%p283) target = $region40
        $region39: #{tpu_custom_call.1} parent=27 // pred_region
          %286 = vst [vmem:[%s266] sm:$0xff] 0.0
          %287 = vst [vmem:[%s273] sm:$0xff] 0.0
        $region40: #{tpu_custom_call.1} parent=27 // pred_fallthru
          _
        %v288 = vld [vmem:[%s230] sm:$0xff]
        %v289 = vld [vmem:[%s230 + $0x8] sm:$0xff]
        %v290 = vld [vmem:[%s240] sm:$0xff]
        %v291 = vld [vmem:[%s240 + $0x8] sm:$0xff]
        %s292 = sadd.s32 %s31, %s32
        %s293 = smul.u32 %s292, 16
        %v294 = vlaneseq
        %v295 = vshrl.u32 %v294, 7
        %v296 = vadd.s32 %v295, 8
        %v297 = vstv %s293
        %v298 = vadd.s32 %v297, %v295
        %v299 = vadd.s32 %v297, %v296
        %vm300 = vcmp.lt.s32.totalorder %v298, 16
        %vm301 = vcmp.lt.s32.totalorder %v299, 16
        %v302 = vmax.f32 %v290, 1e-12
        %v303 = vmax.f32 %v291, 1e-12
        %v304 = vlog2.pop %v302
        %v305 = vmul.f32 %v304, 0.6931472
        %v306 = vlog2.pop %v303
        %v307 = vmul.f32 %v306, 0.6931472
        %vm308 = vcmp.eq.f32.partialorder %v288, 1.0
        %vm309 = vcmp.eq.f32.partialorder %v289, 1.0
        %vm310 = vmand %vm300, %vm308
        %vm311 = vmand %vm301, %vm309
        %v312 = vsel %vm310, %v305, 0.0
        %v313 = vsel %vm311, %v307, 0.0
        %v314 = vsel %vm300, %v288, 0.0
        %v315 = vsel %vm301, %v289, 0.0
        %v316 = vld [vmem:[%s266] sm:$0xff]
        %v317 = vadd.f32 %v312, %v313
        %v318 = vadd.f32 %v316, %v317
        %319 = vst [vmem:[%s266] sm:$0xff] %v318
        %v320 = vld [vmem:[%s273] sm:$0xff]
        %v321 = vadd.f32 %v314, %v315
        %v322 = vadd.f32 %v320, %v321
        %323 = vst [vmem:[%s273] sm:$0xff] %v322
        %s324 = sand.u32 %s111, 1
        %s325 = scalar_lea.sflag [#allocation4], %s324
        %s326 = sand.u32 %s111, 1
        %s327 = smul.addr %s326, 8
        %s328 = scalar_lea.vmem [#allocation7], %s327
        %s329 = sand.u32 %s137, 1
        %s330 = scalar_lea.sflag [#allocation9], %s329
        %s331 = sand.u32 %s137, 1
        %s332 = smul.addr %s331, 8
        %s333 = scalar_lea.vmem [#allocation8], %s332
        // Predicated region
        $region41: #{tpu_custom_call.1} parent=27 // pred_check
          %p334 = pneg %p121
        $region42: #{tpu_custom_call.1} parent=27 // pred_check_branch
          %336 = sbr.rel (%p334) target = $region44
        $region43: #{tpu_custom_call.1} parent=27 // pred_region
          %338 = vsyncadd %s325, 0
          %s339 = smul.addr %s31, 8
          %s340 = scalar_lea.hbm %s2, %s339
          %s342 = sshll.u32 %s328, 4
          %s343 = int_to_ptr.vmem [resolvable:$true] %s342
          %s344 = sshll.u32 %s340, 4
          %s345 = int_to_ptr.hbm [resolvable:$true] %s344
          %347 = dma.vmem_to_hbm [thread:$0]  %s343, 128, %s345, %s325
        $region44: #{tpu_custom_call.1} parent=27 // pred_fallthru
          _
        // Predicated region
        $region45: #{tpu_custom_call.1} parent=27 // pred_check
          %p348 = pneg %p147
        $region46: #{tpu_custom_call.1} parent=27 // pred_check_branch
          %350 = sbr.rel (%p348) target = $region48
        $region47: #{tpu_custom_call.1} parent=27 // pred_region
          %352 = vsyncadd %s330, 0
          %s353 = smul.addr %s31, 8
          %s354 = scalar_lea.hbm %s3, %s353
          %s356 = sshll.u32 %s333, 4
          %s357 = int_to_ptr.vmem [resolvable:$true] %s356
          %s358 = sshll.u32 %s354, 4
          %s359 = int_to_ptr.hbm [resolvable:$true] %s358
          %361 = dma.vmem_to_hbm [thread:$0]  %s357, 128, %s359, %s330
        $region48: #{tpu_custom_call.1} parent=27 // pred_fallthru
          _
      $region28: #{tpu_custom_call.1} parent=5 // pred_fallthru
        _
      %p362 = scmp.le.s32.totalorder 2, %s22
      // Predicated region
      $region49: #{tpu_custom_call.1} parent=5 // pred_check
        %p363 = pneg %p362
      $region50: #{tpu_custom_call.1} parent=5 // pred_check_branch
        %365 = sbr.rel (%p363) target = $region52
      $region51: #{tpu_custom_call.1} parent=5 // pred_region
        %s366 = ssub.s32 %s22, 2
        // Predicated region
        $region53: #{tpu_custom_call.1} parent=51 // pred_check
          %p367 = pneg %p127
        $region54: #{tpu_custom_call.1} parent=51 // pred_check_branch
          %369 = sbr.rel (%p367) target = $region56
        $region55: #{tpu_custom_call.1} parent=51 // pred_region
          %s370 = sand.u32 %s112, 1
          %s371 = scalar_lea.sflag [#allocation4], %s370
          %s372 = sand.u32 %s112, 1
          %s373 = smul.addr %s372, 8
          %s374 = scalar_lea.vmem [#allocation7], %s373
          %376 = dma.done %s371, 128
        $region56: #{tpu_custom_call.1} parent=51 // pred_fallthru
          _
        // Predicated region
        $region57: #{tpu_custom_call.1} parent=51 // pred_check
          %p377 = pneg %p153
        $region58: #{tpu_custom_call.1} parent=51 // pred_check_branch
          %379 = sbr.rel (%p377) target = $region60
        $region59: #{tpu_custom_call.1} parent=51 // pred_region
          %s380 = sand.u32 %s138, 1
          %s381 = scalar_lea.sflag [#allocation9], %s380
          %s382 = sand.u32 %s138, 1
          %s383 = smul.addr %s382, 8
          %s384 = scalar_lea.vmem [#allocation8], %s383
          %386 = dma.done %s381, 128
        $region60: #{tpu_custom_call.1} parent=51 // pred_fallthru
          _
      $region52: #{tpu_custom_call.1} parent=5 // pred_fallthru
        _
    $region6: #{tpu_custom_call.1} parent=1 // loop_footer
      %s26 = sadd.s32 1, %s22
    $region7: #{tpu_custom_call.1} parent=1 // loop_footer_branch
      %21 = sbr.rel target = $region3
    $region8: #{tpu_custom_call.1} parent=1 // loop_exit
      _
    %387 = vsyncpa [#allocation3], 1
    %s388 = scalar_lea.sflag [#allocation3], 1
    %389 = vsyncpa %s388, 1
    %390 = vsyncpa [#allocation6], 1
    %s391 = scalar_lea.sflag [#allocation6], 1
    %392 = vsyncpa %s391, 1
    %393 = vsyncpa [#allocation4], 1
    %s394 = scalar_lea.sflag [#allocation4], 1
    %395 = vsyncpa %s394, 1
    %396 = vsyncpa [#allocation9], 1
    %s397 = scalar_lea.sflag [#allocation9], 1
    %398 = vsyncpa %s397, 1

</llo_original>
